<compile_context>
chip_gen: v5e
topology: v5e:2x2
jax: 0.10.0
libtpu: 0.0.40
codegen_flags: <defaults>
</compile_context>

<pallas_src>
import functools
import math

import jax
import jax.numpy as jnp
from jax.experimental import pallas as pl
from jax.experimental.pallas import tpu as pltpu


def _round_up(n, m):
    return ((n + m - 1) // m) * m


def _maf_fused_kernel(xr_ref, w1_ref, b1_ref, w2_ref, b2_ref, w3_ref, b3_ref,
                      z_ref, ld_ref):
    """One batch tile: 3 fused matmuls -> mu/alpha slabs -> lane-dense z store."""
    xr = xr_ref[...]                              # (TB, D) f32, feature-reversed x
    cdt = w1_ref.dtype                            # matmul input dtype (f32 or bf16)

    h = jnp.tanh(
        jnp.dot(xr.astype(cdt), w1_ref[...],
                preferred_element_type=jnp.float32) + b1_ref[...])     # (TB, L*H)
    h = jnp.tanh(
        jnp.dot(h.astype(cdt), w2_ref[...],
                preferred_element_type=jnp.float32) + b2_ref[...])     # (TB, L*H)
    out = (jnp.dot(h.astype(cdt), w3_ref[...],
                   preferred_element_type=jnp.float32) + b3_ref[...])  # (TB, 2*D)

    D = xr.shape[-1]
    mu = out[:, :D]                               # already in flipped column order
    alpha = out[:, D:]

    z_ref[...] = (xr - mu) * jnp.exp(-alpha)      # single lane-dense store
    ld_ref[...] = -jnp.sum(alpha, axis=-1, keepdims=True)


def _pack_maf_params(params, matmul_dtype):
    """Pack per-layer FCNN params into concatenated / block-diagonal weights."""
    p, w1, b1, w2, b2, w3, b3 = params
    L, D, H = w1.shape                            # L = dim - 1

    # First layer: concat column blocks; reverse rows so it consumes x[:, ::-1].
    w1c = jnp.transpose(w1, (1, 0, 2)).reshape(D, L * H)[::-1, :]
    b1c = b1.reshape(1, L * H)

    # Second layer: block-diagonal (L*H, L*H).
    ar = jnp.arange(L)
    w2b = (jnp.zeros((L, H, L, H), w2.dtype)
           .at[ar, :, ar, :].set(w2)
           .reshape(L * H, L * H))
    b2c = b2.reshape(1, L * H)

    # Head: layer l (feature i = l+1) writes mu to flipped column j = D-2-l and
    # alpha to column D + j.  Feature i = 0 (initial_param) occupies columns
    # D-1 / 2D-1 through the bias only (zero weight columns).
    j = D - 2 - ar
    w3b = (jnp.zeros((L, H, 2, D), w3.dtype)
           .at[ar, :, :, j].set(w3)
           .reshape(L * H, 2 * D))
    b3c = (jnp.zeros((1, 2, D), jnp.float32)
           .at[0, :, j].set(b3[:, 0, :])
           .at[0, :, D - 1].set(p)
           .reshape(1, 2 * D))

    cd = matmul_dtype
    return (w1c.astype(cd), b1c.astype(jnp.float32),
            w2b.astype(cd), b2c.astype(jnp.float32),
            w3b.astype(cd), b3c.astype(jnp.float32))


def maf_forward(params, x, *, block_b=256, matmul_dtype=jnp.float32):
    """Pallas-backed MAF.forward. Returns (z_flipped (B, D), log_det (B,)).

    matmul_dtype=jnp.bfloat16 enables the v6e/v7x MXU fast path (bf16 inputs,
    f32 accumulation); elementwise math stays f32 on all generations.
    """
    B, D = x.shape
    assert D >= 2, "MAF fused kernel expects dim >= 2"

    packed = _pack_maf_params(params, matmul_dtype)
    LH = packed[0].shape[1]

    # Fold the output flip into the input (weights were packed consistently).
    xr = x[:, ::-1]

    # Batch tiling: multiple-of-8 sublane tiles, pad batch if needed.
    tb = min(block_b, _round_up(B, 8))
    tb = max(8, (tb // 8) * 8)
    Bp = _round_up(B, tb)
    if Bp != B:
        xr = jnp.pad(xr, ((0, Bp - B), (0, 0)))
    grid = (Bp // tb,)

    def const(shape):
        return pl.BlockSpec(shape, lambda b: (0, 0))   # resident across grid steps

    z, ld = pl.pallas_call(
        _maf_fused_kernel,
        out_shape=(jax.ShapeDtypeStruct((Bp, D), jnp.float32),
                   jax.ShapeDtypeStruct((Bp, 1), jnp.float32)),
        grid=grid,
        in_specs=[pl.BlockSpec((tb, D), lambda b: (b, 0)),
                  const((D, LH)), const((1, LH)),
                  const((LH, LH)), const((1, LH)),
                  const((LH, 2 * D)), const((1, 2 * D))],
        out_specs=(pl.BlockSpec((tb, D), lambda b: (b, 0)),
                   pl.BlockSpec((tb, 1), lambda b: (b, 0))),
        compiler_params=pltpu.CompilerParams(
            dimension_semantics=("parallel",)),
    )(xr, *packed)

    return z[:B], ld[:B, 0]


def init_maf_params(key, dim, hidden_dim):
    """Deterministic parameter init mirroring the PyTorch module's shapes."""
    n_layers = dim - 1
    keys = jax.random.split(key, 1 + 6 * n_layers)
    p = jax.random.uniform(keys[0], (2,), jnp.float32,
                           -math.sqrt(0.5), math.sqrt(0.5))

    w1 = jnp.zeros((n_layers, dim, hidden_dim), jnp.float32)
    b1 = jnp.zeros((n_layers, 1, hidden_dim), jnp.float32)
    w2 = jnp.zeros((n_layers, hidden_dim, hidden_dim), jnp.float32)
    b2 = jnp.zeros((n_layers, 1, hidden_dim), jnp.float32)
    w3 = jnp.zeros((n_layers, hidden_dim, 2), jnp.float32)
    b3 = jnp.zeros((n_layers, 1, 2), jnp.float32)

    for li in range(n_layers):
        i = li + 1                       # input width of layer li is i
        kk = keys[1 + 6 * li: 1 + 6 * (li + 1)]
        s1 = 1.0 / math.sqrt(i)
        s2 = 1.0 / math.sqrt(hidden_dim)
        w1 = w1.at[li, :i, :].set(
            jax.random.uniform(kk[0], (i, hidden_dim), jnp.float32, -s1, s1))
        b1 = b1.at[li, 0, :].set(
            jax.random.uniform(kk[1], (hidden_dim,), jnp.float32, -s1, s1))
        w2 = w2.at[li].set(
            jax.random.uniform(kk[2], (hidden_dim, hidden_dim), jnp.float32,
                               -s2, s2))
        b2 = b2.at[li, 0, :].set(
            jax.random.uniform(kk[3], (hidden_dim,), jnp.float32, -s2, s2))
        w3 = w3.at[li].set(
            jax.random.uniform(kk[4], (hidden_dim, 2), jnp.float32, -s2, s2))
        b3 = b3.at[li, 0, :].set(
            jax.random.uniform(kk[5], (2,), jnp.float32, -s2, s2))

    return (p, w1, b1, w2, b2, w3, b3)


def maf_forward_ref(params, x):
    """Pure-JAX reference of MAF.forward (same math as the PyTorch module)."""
    p, w1, b1, w2, b2, w3, b3 = params
    B, D = x.shape
    cols = []
    mu0, a0 = p[0], p[1]
    cols.append((x[:, 0] - mu0) / jnp.exp(a0))
    ld = jnp.zeros((B,), jnp.float32) - a0
    for i in range(1, D):
        h1 = jnp.tanh(x[:, :i] @ w1[i - 1, :i, :] + b1[i - 1, 0])
        h2 = jnp.tanh(h1 @ w2[i - 1] + b2[i - 1, 0])
        out = h2 @ w3[i - 1] + b3[i - 1, 0]
        mu, alpha = out[:, 0], out[:, 1]
        cols.append((x[:, i] - mu) / jnp.exp(alpha))
        ld = ld - alpha
    z = jnp.stack(cols, axis=1)[:, ::-1]
    return z, ld


if __name__ == "__main__":
    B, DIM, HIDDEN = 64, 8, 32

    key = jax.random.PRNGKey(0)
    k_param, k_x = jax.random.split(key)
    params = init_maf_params(k_param, DIM, HIDDEN)
    x = jax.random.normal(k_x, (B, DIM), dtype=jnp.float32)

    z_ref, ld_ref = maf_forward_ref(params, x)

    # f32 MXU path (default): tight tolerance, multi-step parallel batch grid.
    fwd_f32 = jax.jit(functools.partial(maf_forward, block_b=32,
                                        matmul_dtype=jnp.float32))
    z, log_det = fwd_f32(params, x)
    jax.block_until_ready((z, log_det))
    assert z.shape == (B, DIM) and log_det.shape == (B,)
    assert jnp.allclose(z, z_ref, atol=2e-3, rtol=2e-3)
    assert jnp.allclose(log_det, ld_ref, atol=2e-3, rtol=2e-3)

    # bf16 MXU-input path (v6e/v7x fast path, f32 accumulation): looser tol.
    fwd_bf16 = jax.jit(functools.partial(maf_forward, block_b=32,
                                         matmul_dtype=jnp.bfloat16))
    z16, ld16 = fwd_bf16(params, x)
    jax.block_until_ready((z16, ld16))
    assert jnp.allclose(z16, z_ref, atol=3e-2, rtol=3e-2)
    assert jnp.allclose(ld16, ld_ref, atol=3e-2, rtol=3e-2)

    print("KERNEL_OK")
</pallas_src>

<mosaic_0001>
module attributes {stable_mosaic.version = 11 : i64} {
  func.func @_maf_fused_kernel(%arg0: i32, %arg1: memref<32x8xf32, #tpu.memory_space<vmem>>, %arg2: memref<8x224xf32, #tpu.memory_space<vmem>>, %arg3: memref<1x224xf32, #tpu.memory_space<vmem>>, %arg4: memref<224x224xf32, #tpu.memory_space<vmem>>, %arg5: memref<1x224xf32, #tpu.memory_space<vmem>>, %arg6: memref<224x16xf32, #tpu.memory_space<vmem>>, %arg7: memref<1x16xf32, #tpu.memory_space<vmem>>, %arg8: memref<32x8xf32, #tpu.memory_space<vmem>>, %arg9: memref<32x1xf32, #tpu.memory_space<vmem>>) attributes {dimension_semantics = [#tpu.dimension_semantics<parallel>], iteration_bounds = array<i64: 2>, scalar_prefetch = 0 : i64, scratch_operands = 0 : i64, tpu.core_type = #tpu.core_type<tc>, window_params = [{transform_indices = @transform_0, window_bounds = array<i64: 32, 8>}, {pipeline_mode = #tpu.pipeline_mode<synchronous>, transform_indices = @transform_1, window_bounds = array<i64: 8, 224>}, {pipeline_mode = #tpu.pipeline_mode<synchronous>, transform_indices = @transform_2, window_bounds = array<i64: 1, 224>}, {pipeline_mode = #tpu.pipeline_mode<synchronous>, transform_indices = @transform_3, window_bounds = array<i64: 224, 224>}, {pipeline_mode = #tpu.pipeline_mode<synchronous>, transform_indices = @transform_4, window_bounds = array<i64: 1, 224>}, {pipeline_mode = #tpu.pipeline_mode<synchronous>, transform_indices = @transform_5, window_bounds = array<i64: 224, 16>}, {pipeline_mode = #tpu.pipeline_mode<synchronous>, transform_indices = @transform_6, window_bounds = array<i64: 1, 16>}, {transform_indices = @transform_7, window_bounds = array<i64: 32, 8>}, {transform_indices = @transform_8, window_bounds = array<i64: 32, 1>}]} {
    %c0 = arith.constant 0 : index
    %c0_0 = arith.constant 0 : index
    %0 = vector.load %arg1[%c0, %c0_0] : memref<32x8xf32, #tpu.memory_space<vmem>>, vector<32x8xf32>
    %c0_1 = arith.constant 0 : index
    %c0_2 = arith.constant 0 : index
    %1 = vector.load %arg2[%c0_1, %c0_2] : memref<8x224xf32, #tpu.memory_space<vmem>>, vector<8x224xf32>
    %cst = arith.constant dense<0.000000e+00> : vector<32x224xf32>
    %2 = tpu.matmul %0, %1, %cst {dimension_numbers = #tpu.dot_dimension_numbers<[1], [0], [0], [1], [0, 0, 1, 1], [], []>} : vector<32x8xf32>, vector<8x224xf32>, vector<32x224xf32> -> vector<32x224xf32>
    %c0_3 = arith.constant 0 : index
    %c0_4 = arith.constant 0 : index
    %3 = vector.load %arg3[%c0_3, %c0_4] : memref<1x224xf32, #tpu.memory_space<vmem>>, vector<1x224xf32>
    %4 = vector.broadcast %3 : vector<1x224xf32> to vector<32x224xf32>
    %5 = arith.addf %2, %4 : vector<32x224xf32>
    %6 = math.tanh %5 : vector<32x224xf32>
    %c0_5 = arith.constant 0 : index
    %c0_6 = arith.constant 0 : index
    %7 = vector.load %arg4[%c0_5, %c0_6] : memref<224x224xf32, #tpu.memory_space<vmem>>, vector<224x224xf32>
    %cst_7 = arith.constant dense<0.000000e+00> : vector<32x224xf32>
    %8 = tpu.matmul %6, %7, %cst_7 {dimension_numbers = #tpu.dot_dimension_numbers<[1], [0], [0], [1], [0, 0, 1, 1], [], []>} : vector<32x224xf32>, vector<224x224xf32>, vector<32x224xf32> -> vector<32x224xf32>
    %c0_8 = arith.constant 0 : index
    %c0_9 = arith.constant 0 : index
    %9 = vector.load %arg5[%c0_8, %c0_9] : memref<1x224xf32, #tpu.memory_space<vmem>>, vector<1x224xf32>
    %10 = vector.broadcast %9 : vector<1x224xf32> to vector<32x224xf32>
    %11 = arith.addf %8, %10 : vector<32x224xf32>
    %12 = math.tanh %11 : vector<32x224xf32>
    %c0_10 = arith.constant 0 : index
    %c0_11 = arith.constant 0 : index
    %13 = vector.load %arg6[%c0_10, %c0_11] : memref<224x16xf32, #tpu.memory_space<vmem>>, vector<224x16xf32>
    %cst_12 = arith.constant dense<0.000000e+00> : vector<32x16xf32>
    %14 = tpu.matmul %12, %13, %cst_12 {dimension_numbers = #tpu.dot_dimension_numbers<[1], [0], [0], [1], [0, 0, 1, 1], [], []>} : vector<32x224xf32>, vector<224x16xf32>, vector<32x16xf32> -> vector<32x16xf32>
    %c0_13 = arith.constant 0 : index
    %c0_14 = arith.constant 0 : index
    %15 = vector.load %arg7[%c0_13, %c0_14] : memref<1x16xf32, #tpu.memory_space<vmem>>, vector<1x16xf32>
    %16 = vector.broadcast %15 : vector<1x16xf32> to vector<32x16xf32>
    %17 = arith.addf %14, %16 : vector<32x16xf32>
    %18 = vector.extract_strided_slice %17 {offsets = [0, 0], sizes = [32, 8], strides = [1, 1]} : vector<32x16xf32> to vector<32x8xf32>
    %19 = vector.extract_strided_slice %17 {offsets = [0, 8], sizes = [32, 8], strides = [1, 1]} : vector<32x16xf32> to vector<32x8xf32>
    %20 = arith.subf %0, %18 : vector<32x8xf32>
    %cst_15 = arith.constant 0.000000e+00 : f32
    %21 = vector.broadcast %cst_15 : f32 to vector<32x8xf32>
    %22 = arith.subf %21, %19 : vector<32x8xf32>
    %23 = math.exp %22 : vector<32x8xf32>
    %24 = arith.mulf %20, %23 : vector<32x8xf32>
    %c0_16 = arith.constant 0 : index
    %c0_17 = arith.constant 0 : index
    %25 = vector.load %arg8[%c0_16, %c0_17] : memref<32x8xf32, #tpu.memory_space<vmem>>, vector<32x8xf32>
    tpu.vector_store %arg8[%c0_16, %c0_17], %24 {strides = array<i32>} : memref<32x8xf32, #tpu.memory_space<vmem>>, vector<32x8xf32>,
    %cst_18 = arith.constant dense<0.000000e+00> : vector<32xf32>
    %26 = vector.multi_reduction <add>, %19, %cst_18 [1] : vector<32x8xf32> to vector<32xf32>
    %27 = vector.shape_cast %26 : vector<32xf32> to vector<32x1xf32>
    %cst_19 = arith.constant 0.000000e+00 : f32
    %28 = vector.broadcast %cst_19 : f32 to vector<32x1xf32>
    %29 = arith.subf %28, %27 : vector<32x1xf32>
    %c0_20 = arith.constant 0 : index
    %c0_21 = arith.constant 0 : index
    %30 = vector.load %arg9[%c0_20, %c0_21] : memref<32x1xf32, #tpu.memory_space<vmem>>, vector<32x1xf32>
    tpu.vector_store %arg9[%c0_20, %c0_21], %29 {strides = array<i32>} : memref<32x1xf32, #tpu.memory_space<vmem>>, vector<32x1xf32>,
    return
  }
  func.func @transform_0(%arg0: i32) -> (i32, i32) {
    %c0_i32 = arith.constant 0 : i32
    %c0_i32_0 = arith.constant 0 : i32
    return %arg0, %c0_i32 : i32, i32
  }
  func.func @transform_1(%arg0: i32) -> (i32, i32) {
    %c0_i32 = arith.constant 0 : i32
    %c0_i32_0 = arith.constant 0 : i32
    %c0_i32_1 = arith.constant 0 : i32
    return %c0_i32, %c0_i32_0 : i32, i32
  }
  func.func @transform_2(%arg0: i32) -> (i32, i32) {
    %c0_i32 = arith.constant 0 : i32
    %c0_i32_0 = arith.constant 0 : i32
    %c0_i32_1 = arith.constant 0 : i32
    return %c0_i32, %c0_i32_0 : i32, i32
  }
  func.func @transform_3(%arg0: i32) -> (i32, i32) {
    %c0_i32 = arith.constant 0 : i32
    %c0_i32_0 = arith.constant 0 : i32
    %c0_i32_1 = arith.constant 0 : i32
    return %c0_i32, %c0_i32_0 : i32, i32
  }
  func.func @transform_4(%arg0: i32) -> (i32, i32) {
    %c0_i32 = arith.constant 0 : i32
    %c0_i32_0 = arith.constant 0 : i32
    %c0_i32_1 = arith.constant 0 : i32
    return %c0_i32, %c0_i32_0 : i32, i32
  }
  func.func @transform_5(%arg0: i32) -> (i32, i32) {
    %c0_i32 = arith.constant 0 : i32
    %c0_i32_0 = arith.constant 0 : i32
    %c0_i32_1 = arith.constant 0 : i32
    return %c0_i32, %c0_i32_0 : i32, i32
  }
  func.func @transform_6(%arg0: i32) -> (i32, i32) {
    %c0_i32 = arith.constant 0 : i32
    %c0_i32_0 = arith.constant 0 : i32
    %c0_i32_1 = arith.constant 0 : i32
    return %c0_i32, %c0_i32_0 : i32, i32
  }
  func.func @transform_7(%arg0: i32) -> (i32, i32) {
    %c0_i32 = arith.constant 0 : i32
    %c0_i32_0 = arith.constant 0 : i32
    return %arg0, %c0_i32 : i32, i32
  }
  func.func @transform_8(%arg0: i32) -> (i32, i32) {
    %c0_i32 = arith.constant 0 : i32
    %c0_i32_0 = arith.constant 0 : i32
    return %arg0, %c0_i32 : i32, i32
  }
}

</mosaic_0001>

<llo_original>
// kernel: maf_forward.1
$region0: #{maf_forward.1}
  #allocation0 [shape = 'u32[]', space=smem, size = 0x4, offset = 0x4, fixed_abs, tag = 'smem constant byte address 0x4 - core index']
  #allocation1 [shape = 'u32[72,128]{1,0:T(1,128)}', space=vmem, size = 0x9000, scoped, tag = 'internal scratch']
  %s0 = inlined_call_operand.vmem [shape: f32[64,8], index: 0, kind: input, shape index: {}]
  %s1 = inlined_call_operand.vmem [shape: f32[8,224], index: 1, kind: input, shape index: {}]
  %s2 = inlined_call_operand.vmem [shape: f32[1,224], index: 2, kind: input, shape index: {}]
  %s3 = inlined_call_operand.vmem [shape: f32[224,224], index: 3, kind: input, shape index: {}]
  %s4 = inlined_call_operand.vmem [shape: f32[1,224], index: 4, kind: input, shape index: {}]
  %s5 = inlined_call_operand.vmem [shape: f32[224,16], index: 5, kind: input, shape index: {}]
  %s6 = inlined_call_operand.vmem [shape: f32[1,16], index: 6, kind: input, shape index: {}]
  %s7 = inlined_call_operand.vmem [shape: f32[64,8], index: 7, kind: output, shape index: {0}]
  %s8 = inlined_call_operand.vmem [shape: f32[64,1], index: 8, kind: output, shape index: {1}]
  %9 = xla_tuple %s7, %s8
  %s10 = sld [smem:[#allocation0]]
  $region69: #{maf_forward.1} parent=0
    _
  %s12 = ssub.s32 1, %s10
  %s13 = scalar_select 0, %s12, %s10
  loop: start=0, step=1, limit=4
  $region2: #{maf_forward.1} parent=0 // loop_pre_header
    _
  $region3: #{maf_forward.1} parent=0 // loop_header
    %s15 = sphi 0, %s19
    %p16 = scmp.ge.s32.totalorder %s15, 4
    %s25 = sphi 0, %s27
    %s28 = sphi 0, %s25
    %s29 = sphi 0, %s28
    %s45 = sphi 0, %s29
    %s49 = sphi 0, %s49
    %s51 = sphi 0, %s49
    %s52 = sphi 0, %s51
    %s66 = sphi 0, %s52
    %s70 = sphi 0, %s70
    %s72 = sphi 0, %s70
    %s73 = sphi 0, %s72
    %s87 = sphi 0, %s73
    %s91 = sphi 0, %s91
    %s93 = sphi 0, %s91
    %s94 = sphi 0, %s93
    %s108 = sphi 0, %s94
    %s112 = sphi 0, %s112
    %s114 = sphi 0, %s112
    %s115 = sphi 0, %s114
    %s129 = sphi 0, %s115
    %s133 = sphi 0, %s133
    %s135 = sphi 0, %s133
    %s136 = sphi 0, %s135
    %s150 = sphi 0, %s136
    %s154 = sphi 0, %s154
    %s156 = sphi 0, %s154
    %s157 = sphi 0, %s156
    %s171 = sphi 0, %s157
    %s177 = sphi 0, %s179
    %s180 = sphi 0, %s177
    %s181 = sphi 0, %s180
    %s197 = sphi 0, %s181
    %s203 = sphi 0, %s205
    %s206 = sphi 0, %s203
    %s207 = sphi 0, %s206
    %s223 = sphi 0, %s207
  $region4: #{maf_forward.1} parent=0 // loop_header_branch
    %18 = sbr.rel (%p16) target = $region8
  $region5: #{maf_forward.1} parent=0 // loop_body
    %s20 = ssub.s32 %s15, 1
    %s21 = ssub.s32 %s15, 2
    %s22 = sadd.s32 %s15, 1
    %s23 = ssub.s32 %s15, %s22
    %p24 = scmp.eq.s32.totalorder %s23, 0
    %s26 = sadd.s32 %s25, 1
    %s27 = scalar_select %p24, %s25, %s26
    %p30 = pneg %p24
    %p31 = scmp.eq.s32.totalorder %s15, 1
    %p32 = por %p30, %p31
    %p33 = scmp.ne.s32.totalorder %s25, %s28
    %p34 = scmp.eq.s32.totalorder %s15, 0
    %p35 = por %p33, %p34
    %p36 = scmp.ne.s32.totalorder %s25, %s28
    %p37 = scmp.eq.s32.totalorder %s20, 1
    %p38 = por %p36, %p37
    %p39 = scmp.ne.s32.totalorder %s28, %s29
    %p40 = scmp.eq.s32.totalorder %s20, 0
    %p41 = por %p39, %p40
    %p42 = scmp.ne.s32.totalorder %s28, %s29
    %p43 = scmp.eq.s32.totalorder %s21, 1
    %p44 = por %p42, %p43
    %p46 = scmp.ne.s32.totalorder %s29, %s45
    %p47 = scmp.eq.s32.totalorder %s21, 0
    %p48 = por %p46, %p47
    %s50 = sadd.s32 %s49, 1
    %p53 = scmp.eq.s32.totalorder %s15, 1
    %p54 = scmp.ne.s32.totalorder %s49, %s51
    %p55 = scmp.eq.s32.totalorder %s15, 0
    %p56 = por %p54, %p55
    %p57 = scmp.ne.s32.totalorder %s49, %s51
    %p58 = scmp.eq.s32.totalorder %s20, 1
    %p59 = por %p57, %p58
    %p60 = scmp.ne.s32.totalorder %s51, %s52
    %p61 = scmp.eq.s32.totalorder %s20, 0
    %p62 = por %p60, %p61
    %p63 = scmp.ne.s32.totalorder %s51, %s52
    %p64 = scmp.eq.s32.totalorder %s21, 1
    %p65 = por %p63, %p64
    %p67 = scmp.ne.s32.totalorder %s52, %s66
    %p68 = scmp.eq.s32.totalorder %s21, 0
    %p69 = por %p67, %p68
    %s71 = sadd.s32 %s70, 1
    %p74 = scmp.eq.s32.totalorder %s15, 1
    %p75 = scmp.ne.s32.totalorder %s70, %s72
    %p76 = scmp.eq.s32.totalorder %s15, 0
    %p77 = por %p75, %p76
    %p78 = scmp.ne.s32.totalorder %s70, %s72
    %p79 = scmp.eq.s32.totalorder %s20, 1
    %p80 = por %p78, %p79
    %p81 = scmp.ne.s32.totalorder %s72, %s73
    %p82 = scmp.eq.s32.totalorder %s20, 0
    %p83 = por %p81, %p82
    %p84 = scmp.ne.s32.totalorder %s72, %s73
    %p85 = scmp.eq.s32.totalorder %s21, 1
    %p86 = por %p84, %p85
    %p88 = scmp.ne.s32.totalorder %s73, %s87
    %p89 = scmp.eq.s32.totalorder %s21, 0
    %p90 = por %p88, %p89
    %s92 = sadd.s32 %s91, 1
    %p95 = scmp.eq.s32.totalorder %s15, 1
    %p96 = scmp.ne.s32.totalorder %s91, %s93
    %p97 = scmp.eq.s32.totalorder %s15, 0
    %p98 = por %p96, %p97
    %p99 = scmp.ne.s32.totalorder %s91, %s93
    %p100 = scmp.eq.s32.totalorder %s20, 1
    %p101 = por %p99, %p100
    %p102 = scmp.ne.s32.totalorder %s93, %s94
    %p103 = scmp.eq.s32.totalorder %s20, 0
    %p104 = por %p102, %p103
    %p105 = scmp.ne.s32.totalorder %s93, %s94
    %p106 = scmp.eq.s32.totalorder %s21, 1
    %p107 = por %p105, %p106
    %p109 = scmp.ne.s32.totalorder %s94, %s108
    %p110 = scmp.eq.s32.totalorder %s21, 0
    %p111 = por %p109, %p110
    %s113 = sadd.s32 %s112, 1
    %p116 = scmp.eq.s32.totalorder %s15, 1
    %p117 = scmp.ne.s32.totalorder %s112, %s114
    %p118 = scmp.eq.s32.totalorder %s15, 0
    %p119 = por %p117, %p118
    %p120 = scmp.ne.s32.totalorder %s112, %s114
    %p121 = scmp.eq.s32.totalorder %s20, 1
    %p122 = por %p120, %p121
    %p123 = scmp.ne.s32.totalorder %s114, %s115
    %p124 = scmp.eq.s32.totalorder %s20, 0
    %p125 = por %p123, %p124
    %p126 = scmp.ne.s32.totalorder %s114, %s115
    %p127 = scmp.eq.s32.totalorder %s21, 1
    %p128 = por %p126, %p127
    %p130 = scmp.ne.s32.totalorder %s115, %s129
    %p131 = scmp.eq.s32.totalorder %s21, 0
    %p132 = por %p130, %p131
    %s134 = sadd.s32 %s133, 1
    %p137 = scmp.eq.s32.totalorder %s15, 1
    %p138 = scmp.ne.s32.totalorder %s133, %s135
    %p139 = scmp.eq.s32.totalorder %s15, 0
    %p140 = por %p138, %p139
    %p141 = scmp.ne.s32.totalorder %s133, %s135
    %p142 = scmp.eq.s32.totalorder %s20, 1
    %p143 = por %p141, %p142
    %p144 = scmp.ne.s32.totalorder %s135, %s136
    %p145 = scmp.eq.s32.totalorder %s20, 0
    %p146 = por %p144, %p145
    %p147 = scmp.ne.s32.totalorder %s135, %s136
    %p148 = scmp.eq.s32.totalorder %s21, 1
    %p149 = por %p147, %p148
    %p151 = scmp.ne.s32.totalorder %s136, %s150
    %p152 = scmp.eq.s32.totalorder %s21, 0
    %p153 = por %p151, %p152
    %s155 = sadd.s32 %s154, 1
    %p158 = scmp.eq.s32.totalorder %s15, 1
    %p159 = scmp.ne.s32.totalorder %s154, %s156
    %p160 = scmp.eq.s32.totalorder %s15, 0
    %p161 = por %p159, %p160
    %p162 = scmp.ne.s32.totalorder %s154, %s156
    %p163 = scmp.eq.s32.totalorder %s20, 1
    %p164 = por %p162, %p163
    %p165 = scmp.ne.s32.totalorder %s156, %s157
    %p166 = scmp.eq.s32.totalorder %s20, 0
    %p167 = por %p165, %p166
    %p168 = scmp.ne.s32.totalorder %s156, %s157
    %p169 = scmp.eq.s32.totalorder %s21, 1
    %p170 = por %p168, %p169
    %p172 = scmp.ne.s32.totalorder %s157, %s171
    %p173 = scmp.eq.s32.totalorder %s21, 0
    %p174 = por %p172, %p173
    %s175 = ssub.s32 %s15, %s22
    %p176 = scmp.eq.s32.totalorder %s175, 0
    %s178 = sadd.s32 %s177, 1
    %s179 = scalar_select %p176, %s177, %s178
    %p182 = pneg %p176
    %p183 = scmp.eq.s32.totalorder %s15, 1
    %p184 = por %p182, %p183
    %p185 = scmp.ne.s32.totalorder %s177, %s180
    %p186 = scmp.eq.s32.totalorder %s15, 0
    %p187 = por %p185, %p186
    %p188 = scmp.ne.s32.totalorder %s177, %s180
    %p189 = scmp.eq.s32.totalorder %s20, 1
    %p190 = por %p188, %p189
    %p191 = scmp.ne.s32.totalorder %s180, %s181
    %p192 = scmp.eq.s32.totalorder %s20, 0
    %p193 = por %p191, %p192
    %p194 = scmp.ne.s32.totalorder %s180, %s181
    %p195 = scmp.eq.s32.totalorder %s21, 1
    %p196 = por %p194, %p195
    %p198 = scmp.ne.s32.totalorder %s181, %s197
    %p199 = scmp.eq.s32.totalorder %s21, 0
    %p200 = por %p198, %p199
    %s201 = ssub.s32 %s15, %s22
    %p202 = scmp.eq.s32.totalorder %s201, 0
    %s204 = sadd.s32 %s203, 1
    %s205 = scalar_select %p202, %s203, %s204
    %p208 = pneg %p202
    %p209 = scmp.eq.s32.totalorder %s15, 1
    %p210 = por %p208, %p209
    %p211 = scmp.ne.s32.totalorder %s203, %s206
    %p212 = scmp.eq.s32.totalorder %s15, 0
    %p213 = por %p211, %p212
    %p214 = scmp.ne.s32.totalorder %s203, %s206
    %p215 = scmp.eq.s32.totalorder %s20, 1
    %p216 = por %p214, %p215
    %p217 = scmp.ne.s32.totalorder %s206, %s207
    %p218 = scmp.eq.s32.totalorder %s20, 0
    %p219 = por %p217, %p218
    %p220 = scmp.ne.s32.totalorder %s206, %s207
    %p221 = scmp.eq.s32.totalorder %s21, 1
    %p222 = por %p220, %p221
    %p224 = scmp.ne.s32.totalorder %s207, %s223
    %p225 = scmp.eq.s32.totalorder %s21, 0
    %p226 = por %p224, %p225
    %p227 = scmp.le.s32.totalorder 1, %s15
    %p228 = scmp.lt.s32.totalorder %s15, 3
    %p229 = pnand %p227, %p228
    %p230 = pneg %p229
    // Predicated region
    $region9: #{maf_forward.1} parent=5 // pred_check
      _
    $region10: #{maf_forward.1} parent=5 // pred_check_branch
      %232 = sbr.rel (%p229) target = $region12
    $region11: #{maf_forward.1} parent=5 // pred_region
      %s233 = ssub.s32 %s15, 1
      // Predicated region
      $region13: #{maf_forward.1} parent=11 // pred_check
        %p234 = pneg %p62
      $region14: #{maf_forward.1} parent=11 // pred_check_branch
        %236 = sbr.rel (%p234) target = $region16
      $region15: #{maf_forward.1} parent=11 // pred_region
        _
      $region16: #{maf_forward.1} parent=11 // pred_fallthru
        _
      // Predicated region
      $region17: #{maf_forward.1} parent=11 // pred_check
        %p237 = pneg %p83
      $region18: #{maf_forward.1} parent=11 // pred_check_branch
        %239 = sbr.rel (%p237) target = $region20
      $region19: #{maf_forward.1} parent=11 // pred_region
        _
      $region20: #{maf_forward.1} parent=11 // pred_fallthru
        _
      // Predicated region
      $region21: #{maf_forward.1} parent=11 // pred_check
        %p240 = pneg %p104
      $region22: #{maf_forward.1} parent=11 // pred_check_branch
        %242 = sbr.rel (%p240) target = $region24
      $region23: #{maf_forward.1} parent=11 // pred_region
        _
      $region24: #{maf_forward.1} parent=11 // pred_fallthru
        _
      // Predicated region
      $region25: #{maf_forward.1} parent=11 // pred_check
        %p243 = pneg %p125
      $region26: #{maf_forward.1} parent=11 // pred_check_branch
        %245 = sbr.rel (%p243) target = $region28
      $region27: #{maf_forward.1} parent=11 // pred_region
        _
      $region28: #{maf_forward.1} parent=11 // pred_fallthru
        _
      // Predicated region
      $region29: #{maf_forward.1} parent=11 // pred_check
        %p246 = pneg %p146
      $region30: #{maf_forward.1} parent=11 // pred_check_branch
        %248 = sbr.rel (%p246) target = $region32
      $region31: #{maf_forward.1} parent=11 // pred_region
        _
      $region32: #{maf_forward.1} parent=11 // pred_fallthru
        _
      // Predicated region
      $region33: #{maf_forward.1} parent=11 // pred_check
        %p249 = pneg %p167
      $region34: #{maf_forward.1} parent=11 // pred_check_branch
        %251 = sbr.rel (%p249) target = $region36
      $region35: #{maf_forward.1} parent=11 // pred_region
        _
      $region36: #{maf_forward.1} parent=11 // pred_fallthru
        _
    $region12: #{maf_forward.1} parent=5 // pred_fallthru
      _
    %p252 = scmp.lt.s32.totalorder %s15, 2
    // Predicated region
    $region37: #{maf_forward.1} parent=5 // pred_check
      %p253 = pneg %p252
    $region38: #{maf_forward.1} parent=5 // pred_check_branch
      %255 = sbr.rel (%p253) target = $region40
    $region39: #{maf_forward.1} parent=5 // pred_region
      // Predicated region
      $region41: #{maf_forward.1} parent=39 // pred_check
        %p256 = pneg %p35
      $region42: #{maf_forward.1} parent=39 // pred_check_branch
        %258 = sbr.rel (%p256) target = $region44
      $region43: #{maf_forward.1} parent=39 // pred_region
        %s259 = smul.u32 4, %s15
        %p260 = scmp.lt.s32.totalorder %s259, 7
        %s261 = scalar_select %p260, %s259, 7
        %s262 = smul.addr %s261, 8
        %s263 = scalar_lea.vmem %s0, %s262
        %s264 = smul.u32 4, %s15
      $region44: #{maf_forward.1} parent=39 // pred_fallthru
        _
    $region40: #{maf_forward.1} parent=5 // pred_fallthru
      _
    %p265 = scmp.le.s32.totalorder 1, %s15
    %p266 = scmp.lt.s32.totalorder %s15, 3
    %p267 = pnand %p265, %p266
    %p268 = pneg %p267
    // Predicated region
    $region45: #{maf_forward.1} parent=5 // pred_check
      _
    $region46: #{maf_forward.1} parent=5 // pred_check_branch
      %270 = sbr.rel (%p267) target = $region48
    $region47: #{maf_forward.1} parent=5 // pred_region
      %s271 = ssub.s32 %s15, 1
      %s272 = smul.u32 4, %s20
      %p273 = scmp.lt.s32.totalorder %s272, 7
      %s274 = scalar_select %p273, %s272, 7
      %s275 = smul.addr %s274, 8
      %s276 = scalar_lea.vmem %s0, %s275
      %p277 = pneg %p41
      %p278 = pneg %p38
      %p279 = pneg %p62
      %p280 = pneg %p59
      %p281 = pneg %p83
      %p282 = pneg %p80
      %p283 = pneg %p104
      %p284 = pneg %p101
      %p285 = pneg %p125
      %p286 = pneg %p122
      %p287 = pneg %p146
      %p288 = pneg %p143
      %p289 = pneg %p167
      %p290 = pneg %p164
      %p291 = pneg %p193
      %p292 = pneg %p190
      %s293 = smul.u32 4, %s20
      %p294 = scmp.lt.s32.totalorder %s293, 7
      %s295 = scalar_select %p294, %s293, 7
      %s296 = smul.addr %s295, 8
      %s297 = scalar_lea.vmem %s7, %s296
      %p298 = pneg %p219
      %p299 = pneg %p216
      %s300 = smul.u32 4, %s20
      %p301 = scmp.lt.s32.totalorder %s300, 7
      %s302 = scalar_select %p301, %s300, 7
      %s303 = smul.addr %s302, 8
      %s304 = scalar_lea.vmem %s8, %s303
      %s305 = smul.u32 4, %s20
      %p306 = scmp.lt.s32.totalorder %s305, 7
      %s307 = scalar_select %p306, %s305, 7
      %s308 = smul.addr %s307, 8
      %s309 = scalar_lea.vmem %s0, %s308
      %s310 = smul.u32 4, %s20
      %s311 = smul.u32 4, %s20
      %p312 = scmp.lt.s32.totalorder %s311, 7
      %s313 = scalar_select %p312, %s311, 7
      %s314 = smul.addr %s313, 8
      %s315 = scalar_lea.vmem %s7, %s314
      %s316 = smul.u32 4, %s20
      %s317 = smul.u32 4, %s20
      %p318 = scmp.lt.s32.totalorder %s317, 7
      %s319 = scalar_select %p318, %s317, 7
      %s320 = smul.addr %s319, 8
      %s321 = scalar_lea.vmem %s8, %s320
      %s322 = smul.u32 4, %s20
      %v323 = vld [vmem:[%s309] sm:$0xff]
      %v324 = vld [vmem:[%s309 + $0x8] sm:$0xff]
      %v325 = vld [vmem:[%s309 + $0x10] sm:$0xff]
      %v326 = vld [vmem:[%s309 + $0x18] sm:$0xff]
      %v327 = vld [vmem:[%s1] sm:$0xff]
      %v328 = vld [vmem:[%s1 + $0x8] sm:$0xff]
      %v329 = vld [vmem:[%s2] sm:$0x3]
      %v331 = vperm.slane %v329, 0
      %v332 = vperm.slane %v329, 1
      %vm335 = vcmask 64512
      %v337 = vsel %vm335, %v323, 0
      %v340 = vsel %vm335, %v324, 0
      %v343 = vsel %vm335, %v325, 0
      %v346 = vsel %vm335, %v326, 0
      %348 = vmatpush.msra.mxu0 0.0
      %349 = vmatpush.msra.mxu0 0.0
      %350 = vmatpush.msra.mxu0 0.0
      %351 = vmatpush.msra.mxu0 0.0
      %352 = vmatpush.msra.mxu0 0.0
      %353 = vmatpush.msra.mxu0 0.0
      %354 = vmatpush.msra.mxu0 0.0
      %355 = vmatpush.msra.mxu0 0.0
      %356 = vmatpush.msra.mxu0 0.0
      %357 = vmatpush.msra.mxu0 0.0
      %358 = vmatpush.msra.mxu0 0.0
      %359 = vmatpush.msra.mxu0 0.0
      %360 = vmatpush.msra.mxu0 0.0
      %361 = vmatpush.msra.mxu0 0.0
      %362 = vmatpush.msra.mxu0 0.0
      %363 = vmatpush.msra.mxu0 %v327
      %364 = vmatmul.f32.gmra.mxu0 %v337
      %v365 = vpop.f32.mrf.mxu0
      %v366 = vadd.f32 %v331, %v365
      %367 = vmatmul.f32.gmra.mxu0 %v340
      %v368 = vpop.f32.mrf.mxu0
      %v369 = vadd.f32 %v331, %v368
      %370 = vmatmul.f32.gmra.mxu0 %v343
      %v371 = vpop.f32.mrf.mxu0
      %v372 = vadd.f32 %v331, %v371
      %373 = vmatmul.f32.gmra.mxu0 %v346
      %v374 = vpop.f32.mrf.mxu0
      %v375 = vadd.f32 %v331, %v374
      %376 = vdwg.mxu0
      %377 = vmatpush.msra.mxu0 0.0
      %378 = vmatpush.msra.mxu0 0.0
      %379 = vmatpush.msra.mxu0 0.0
      %380 = vmatpush.msra.mxu0 0.0
      %381 = vmatpush.msra.mxu0 0.0
      %382 = vmatpush.msra.mxu0 0.0
      %383 = vmatpush.msra.mxu0 0.0
      %384 = vmatpush.msra.mxu0 0.0
      %385 = vmatpush.msra.mxu0 0.0
      %386 = vmatpush.msra.mxu0 0.0
      %387 = vmatpush.msra.mxu0 0.0
      %388 = vmatpush.msra.mxu0 0.0
      %389 = vmatpush.msra.mxu0 0.0
      %390 = vmatpush.msra.mxu0 0.0
      %391 = vmatpush.msra.mxu0 0.0
      %392 = vmatpush.msra.mxu0 %v328
      %393 = vmatmul.f32.gmra.mxu0 %v337
      %v394 = vpop.f32.mrf.mxu0
      %v395 = vadd.f32 %v332, %v394
      %396 = vmatmul.f32.gmra.mxu0 %v340
      %v397 = vpop.f32.mrf.mxu0
      %v398 = vadd.f32 %v332, %v397
      %399 = vmatmul.f32.gmra.mxu0 %v343
      %v400 = vpop.f32.mrf.mxu0
      %v401 = vadd.f32 %v332, %v400
      %402 = vmatmul.f32.gmra.mxu0 %v346
      %v403 = vpop.f32.mrf.mxu0
      %v404 = vadd.f32 %v332, %v403
      %405 = vdwg.mxu0
      %v406 = vtanh.pop %v366
      %v407 = vtanh.pop %v395
      %v408 = vtanh.pop %v369
      %v409 = vtanh.pop %v398
      %v410 = vtanh.pop %v372
      %v411 = vtanh.pop %v401
      %v412 = vtanh.pop %v375
      %v413 = vtanh.pop %v404
      %v414 = vld [vmem:[%s3] sm:$0xff]
      %v415 = vld [vmem:[%s3 + $0x8] sm:$0xff]
      %v416 = vld [vmem:[%s3 + $0x10] sm:$0xff]
      %v417 = vld [vmem:[%s3 + $0x18] sm:$0xff]
      %v418 = vld [vmem:[%s3 + $0x20] sm:$0xff]
      %v419 = vld [vmem:[%s3 + $0x28] sm:$0xff]
      %v420 = vld [vmem:[%s3 + $0x30] sm:$0xff]
      %v421 = vld [vmem:[%s3 + $0x38] sm:$0xff]
      %v422 = vld [vmem:[%s3 + $0x40] sm:$0xff]
      %v423 = vld [vmem:[%s3 + $0x48] sm:$0xff]
      %v424 = vld [vmem:[%s3 + $0x50] sm:$0xff]
      %v425 = vld [vmem:[%s3 + $0x58] sm:$0xff]
      %v426 = vld [vmem:[%s3 + $0x60] sm:$0xff]
      %v427 = vld [vmem:[%s3 + $0x68] sm:$0xff]
      %v428 = vld [vmem:[%s3 + $0x70] sm:$0xff]
      %v429 = vld [vmem:[%s3 + $0x78] sm:$0xff]
      %v430 = vld [vmem:[%s3 + $0x80] sm:$0xff]
      %v431 = vld [vmem:[%s3 + $0x88] sm:$0xff]
      %v432 = vld [vmem:[%s3 + $0x90] sm:$0xff]
      %v433 = vld [vmem:[%s3 + $0x98] sm:$0xff]
      %v434 = vld [vmem:[%s3 + $0xa0] sm:$0xff]
      %v435 = vld [vmem:[%s3 + $0xa8] sm:$0xff]
      %v436 = vld [vmem:[%s3 + $0xb0] sm:$0xff]
      %v437 = vld [vmem:[%s3 + $0xb8] sm:$0xff]
      %v438 = vld [vmem:[%s3 + $0xc0] sm:$0xff]
      %v439 = vld [vmem:[%s3 + $0xc8] sm:$0xff]
      %v440 = vld [vmem:[%s3 + $0xd0] sm:$0xff]
      %v441 = vld [vmem:[%s3 + $0xd8] sm:$0xff]
      %v442 = vld [vmem:[%s3 + $0xe0] sm:$0xff]
      %v443 = vld [vmem:[%s3 + $0xe8] sm:$0xff]
      %v444 = vld [vmem:[%s3 + $0xf0] sm:$0xff]
      %v445 = vld [vmem:[%s3 + $0xf8] sm:$0xff]
      %v446 = vld [vmem:[%s3 + $0x100] sm:$0xff]
      %v447 = vld [vmem:[%s3 + $0x108] sm:$0xff]
      %v448 = vld [vmem:[%s3 + $0x110] sm:$0xff]
      %v449 = vld [vmem:[%s3 + $0x118] sm:$0xff]
      %v450 = vld [vmem:[%s3 + $0x120] sm:$0xff]
      %v451 = vld [vmem:[%s3 + $0x128] sm:$0xff]
      %v452 = vld [vmem:[%s3 + $0x130] sm:$0xff]
      %v453 = vld [vmem:[%s3 + $0x138] sm:$0xff]
      %v454 = vld [vmem:[%s3 + $0x140] sm:$0xff]
      %v455 = vld [vmem:[%s3 + $0x148] sm:$0xff]
      %v456 = vld [vmem:[%s3 + $0x150] sm:$0xff]
      %v457 = vld [vmem:[%s3 + $0x158] sm:$0xff]
      %v458 = vld [vmem:[%s3 + $0x160] sm:$0xff]
      %v459 = vld [vmem:[%s3 + $0x168] sm:$0xff]
      %v460 = vld [vmem:[%s3 + $0x170] sm:$0xff]
      %v461 = vld [vmem:[%s3 + $0x178] sm:$0xff]
      %v462 = vld [vmem:[%s3 + $0x180] sm:$0xff]
      %v463 = vld [vmem:[%s3 + $0x188] sm:$0xff]
      %v464 = vld [vmem:[%s3 + $0x190] sm:$0xff]
      %v465 = vld [vmem:[%s3 + $0x198] sm:$0xff]
      %v466 = vld [vmem:[%s3 + $0x1a0] sm:$0xff]
      %v467 = vld [vmem:[%s3 + $0x1a8] sm:$0xff]
      %v468 = vld [vmem:[%s3 + $0x1b0] sm:$0xff]
      %v469 = vld [vmem:[%s3 + $0x1b8] sm:$0xff]
      %v470 = vld [vmem:[%s4] sm:$0x3]
      %v472 = vperm.slane %v470, 0
      %v473 = vperm.slane %v470, 1
      %vm476 = vcmask 785408
      %v478 = vsel %vm476, %v407, 0
      %v481 = vsel %vm476, %v409, 0
      %v484 = vsel %vm476, %v411, 0
      %v487 = vsel %vm476, %v413, 0
      %489 = vmatpush.msra.mxu0 %v444
      %490 = vmatpush.msra.mxu0 %v442
      %491 = vmatpush.msra.mxu0 %v440
      %492 = vmatpush.msra.mxu0 %v438
      %493 = vmatpush.msra.mxu0 %v436
      %494 = vmatpush.msra.mxu0 %v434
      %495 = vmatpush.msra.mxu0 %v432
      %496 = vmatpush.msra.mxu0 %v430
      %497 = vmatpush.msra.mxu0 %v428
      %498 = vmatpush.msra.mxu0 %v426
      %499 = vmatpush.msra.mxu0 %v424
      %500 = vmatpush.msra.mxu0 %v422
      %501 = vmatpush.msra.mxu0 %v420
      %502 = vmatpush.msra.mxu0 %v418
      %503 = vmatpush.msra.mxu0 %v416
      %504 = vmatpush.msra.mxu0 %v414
      %505 = vmatmul.f32.gmra.mxu0 %v406
      %v506 = vpop.f32.mrf.mxu0
      %v507 = vadd.f32 %v472, %v506
      %508 = vmatmul.f32.gmra.mxu0 %v408
      %v509 = vpop.f32.mrf.mxu0
      %v510 = vadd.f32 %v472, %v509
      %511 = vmatmul.f32.gmra.mxu0 %v410
      %v512 = vpop.f32.mrf.mxu0
      %v513 = vadd.f32 %v472, %v512
      %514 = vmatmul.f32.gmra.mxu0 %v412
      %v515 = vpop.f32.mrf.mxu0
      %v516 = vadd.f32 %v472, %v515
      %517 = vdwg.mxu0
      %518 = vmatpush.msra.mxu0 0.0
      %519 = vmatpush.msra.mxu0 0.0
      %520 = vmatpush.msra.mxu0 0.0
      %521 = vmatpush.msra.mxu0 0.0
      %522 = vmatpush.msra.mxu0 %v468
      %523 = vmatpush.msra.mxu0 %v466
      %524 = vmatpush.msra.mxu0 %v464
      %525 = vmatpush.msra.mxu0 %v462
      %526 = vmatpush.msra.mxu0 %v460
      %527 = vmatpush.msra.mxu0 %v458
      %528 = vmatpush.msra.mxu0 %v456
      %529 = vmatpush.msra.mxu0 %v454
      %530 = vmatpush.msra.mxu0 %v452
      %531 = vmatpush.msra.mxu0 %v450
      %532 = vmatpush.msra.mxu0 %v448
      %533 = vmatpush.msra.mxu0 %v446
      %534 = vmatmul.f32.gmra.mxu0 %v478
      %v535 = vpop.f32.mrf.mxu0
      %v536 = vadd.f32 %v507, %v535
      %537 = vmatmul.f32.gmra.mxu0 %v481
      %v538 = vpop.f32.mrf.mxu0
      %v539 = vadd.f32 %v510, %v538
      %540 = vmatmul.f32.gmra.mxu0 %v484
      %v541 = vpop.f32.mrf.mxu0
      %v542 = vadd.f32 %v513, %v541
      %543 = vmatmul.f32.gmra.mxu0 %v487
      %v544 = vpop.f32.mrf.mxu0
      %v545 = vadd.f32 %v516, %v544
      %546 = vdwg.mxu0
      %547 = vmatpush.msra.mxu0 %v445
      %548 = vmatpush.msra.mxu0 %v443
      %549 = vmatpush.msra.mxu0 %v441
      %550 = vmatpush.msra.mxu0 %v439
      %551 = vmatpush.msra.mxu0 %v437
      %552 = vmatpush.msra.mxu0 %v435
      %553 = vmatpush.msra.mxu0 %v433
      %554 = vmatpush.msra.mxu0 %v431
      %555 = vmatpush.msra.mxu0 %v429
      %556 = vmatpush.msra.mxu0 %v427
      %557 = vmatpush.msra.mxu0 %v425
      %558 = vmatpush.msra.mxu0 %v423
      %559 = vmatpush.msra.mxu0 %v421
      %560 = vmatpush.msra.mxu0 %v419
      %561 = vmatpush.msra.mxu0 %v417
      %562 = vmatpush.msra.mxu0 %v415
      %563 = vmatmul.f32.gmra.mxu0 %v406
      %v564 = vpop.f32.mrf.mxu0
      %v565 = vadd.f32 %v473, %v564
      %566 = vmatmul.f32.gmra.mxu0 %v408
      %v567 = vpop.f32.mrf.mxu0
      %v568 = vadd.f32 %v473, %v567
      %569 = vmatmul.f32.gmra.mxu0 %v410
      %v570 = vpop.f32.mrf.mxu0
      %v571 = vadd.f32 %v473, %v570
      %572 = vmatmul.f32.gmra.mxu0 %v412
      %v573 = vpop.f32.mrf.mxu0
      %v574 = vadd.f32 %v473, %v573
      %575 = vdwg.mxu0
      %576 = vmatpush.msra.mxu0 0.0
      %577 = vmatpush.msra.mxu0 0.0
      %578 = vmatpush.msra.mxu0 0.0
      %579 = vmatpush.msra.mxu0 0.0
      %580 = vmatpush.msra.mxu0 %v469
      %581 = vmatpush.msra.mxu0 %v467
      %582 = vmatpush.msra.mxu0 %v465
      %583 = vmatpush.msra.mxu0 %v463
      %584 = vmatpush.msra.mxu0 %v461
      %585 = vmatpush.msra.mxu0 %v459
      %586 = vmatpush.msra.mxu0 %v457
      %587 = vmatpush.msra.mxu0 %v455
      %588 = vmatpush.msra.mxu0 %v453
      %589 = vmatpush.msra.mxu0 %v451
      %590 = vmatpush.msra.mxu0 %v449
      %591 = vmatpush.msra.mxu0 %v447
      %592 = vmatmul.f32.gmra.mxu0 %v478
      %v593 = vpop.f32.mrf.mxu0
      %v594 = vadd.f32 %v565, %v593
      %595 = vmatmul.f32.gmra.mxu0 %v481
      %v596 = vpop.f32.mrf.mxu0
      %v597 = vadd.f32 %v568, %v596
      %598 = vmatmul.f32.gmra.mxu0 %v484
      %v599 = vpop.f32.mrf.mxu0
      %v600 = vadd.f32 %v571, %v599
      %601 = vmatmul.f32.gmra.mxu0 %v487
      %v602 = vpop.f32.mrf.mxu0
      %v603 = vadd.f32 %v574, %v602
      %604 = vdwg.mxu0
      %v605 = vtanh.pop %v536
      %v606 = vtanh.pop %v594
      %v607 = vtanh.pop %v539
      %v608 = vtanh.pop %v597
      %v609 = vtanh.pop %v542
      %v610 = vtanh.pop %v600
      %v611 = vtanh.pop %v545
      %v612 = vtanh.pop %v603
      %v613 = vld [vmem:[%s5] sm:$0xff]
      %v614 = vld [vmem:[%s5 + $0x8] sm:$0xff]
      %v615 = vld [vmem:[%s5 + $0x10] sm:$0xff]
      %v616 = vld [vmem:[%s5 + $0x18] sm:$0xff]
      %v617 = vld [vmem:[%s5 + $0x20] sm:$0xff]
      %v618 = vld [vmem:[%s5 + $0x28] sm:$0xff]
      %v619 = vld [vmem:[%s5 + $0x30] sm:$0xff]
      %v620 = vld [vmem:[%s5 + $0x38] sm:$0xff]
      %v621 = vld [vmem:[%s5 + $0x40] sm:$0xff]
      %v622 = vld [vmem:[%s5 + $0x48] sm:$0xff]
      %v623 = vld [vmem:[%s5 + $0x50] sm:$0xff]
      %v624 = vld [vmem:[%s5 + $0x58] sm:$0xff]
      %v625 = vld [vmem:[%s5 + $0x60] sm:$0xff]
      %v626 = vld [vmem:[%s5 + $0x68] sm:$0xff]
      %v627 = vld [vmem:[%s5 + $0x70] sm:$0xff]
      %v628 = vld [vmem:[%s5 + $0x78] sm:$0xff]
      %v629 = vld [vmem:[%s5 + $0x80] sm:$0xff]
      %v630 = vld [vmem:[%s5 + $0x88] sm:$0xff]
      %v631 = vld [vmem:[%s5 + $0x90] sm:$0xff]
      %v632 = vld [vmem:[%s5 + $0x98] sm:$0xff]
      %v633 = vld [vmem:[%s5 + $0xa0] sm:$0xff]
      %v634 = vld [vmem:[%s5 + $0xa8] sm:$0xff]
      %v635 = vld [vmem:[%s5 + $0xb0] sm:$0xff]
      %v636 = vld [vmem:[%s5 + $0xb8] sm:$0xff]
      %v637 = vld [vmem:[%s5 + $0xc0] sm:$0xff]
      %v638 = vld [vmem:[%s5 + $0xc8] sm:$0xff]
      %v639 = vld [vmem:[%s5 + $0xd0] sm:$0xff]
      %v640 = vld [vmem:[%s5 + $0xd8] sm:$0xff]
      %v641 = vld [vmem:[%s6] sm:$0x1]
      %v643 = vperm.slane %v641, 0
      %v646 = vsel %vm476, %v606, 0
      %v649 = vsel %vm476, %v608, 0
      %v652 = vsel %vm476, %v610, 0
      %v655 = vsel %vm476, %v612, 0
      %657 = vmatpush.msra.mxu0 %v628
      %658 = vmatpush.msra.mxu0 %v627
      %659 = vmatpush.msra.mxu0 %v626
      %660 = vmatpush.msra.mxu0 %v625
      %661 = vmatpush.msra.mxu0 %v624
      %662 = vmatpush.msra.mxu0 %v623
      %663 = vmatpush.msra.mxu0 %v622
      %664 = vmatpush.msra.mxu0 %v621
      %665 = vmatpush.msra.mxu0 %v620
      %666 = vmatpush.msra.mxu0 %v619
      %667 = vmatpush.msra.mxu0 %v618
      %668 = vmatpush.msra.mxu0 %v617
      %669 = vmatpush.msra.mxu0 %v616
      %670 = vmatpush.msra.mxu0 %v615
      %671 = vmatpush.msra.mxu0 %v614
      %672 = vmatpush.msra.mxu0 %v613
      %673 = vmatmul.f32.gmra.mxu0 %v605
      %v674 = vpop.f32.mrf.mxu0
      %v675 = vadd.f32 %v643, %v674
      %676 = vmatmul.f32.gmra.mxu0 %v607
      %v677 = vpop.f32.mrf.mxu0
      %v678 = vadd.f32 %v643, %v677
      %679 = vmatmul.f32.gmra.mxu0 %v609
      %v680 = vpop.f32.mrf.mxu0
      %v681 = vadd.f32 %v643, %v680
      %682 = vmatmul.f32.gmra.mxu0 %v611
      %v683 = vpop.f32.mrf.mxu0
      %v684 = vadd.f32 %v643, %v683
      %685 = vdwg.mxu0
      %686 = vmatpush.msra.mxu0 0.0
      %687 = vmatpush.msra.mxu0 0.0
      %688 = vmatpush.msra.mxu0 0.0
      %689 = vmatpush.msra.mxu0 0.0
      %690 = vmatpush.msra.mxu0 %v640
      %691 = vmatpush.msra.mxu0 %v639
      %692 = vmatpush.msra.mxu0 %v638
      %693 = vmatpush.msra.mxu0 %v637
      %694 = vmatpush.msra.mxu0 %v636
      %695 = vmatpush.msra.mxu0 %v635
      %696 = vmatpush.msra.mxu0 %v634
      %697 = vmatpush.msra.mxu0 %v633
      %698 = vmatpush.msra.mxu0 %v632
      %699 = vmatpush.msra.mxu0 %v631
      %700 = vmatpush.msra.mxu0 %v630
      %701 = vmatpush.msra.mxu0 %v629
      %702 = vmatmul.f32.gmra.mxu0 %v646
      %v703 = vpop.f32.mrf.mxu0
      %v704 = vadd.f32 %v675, %v703
      %705 = vmatmul.f32.gmra.mxu0 %v649
      %v706 = vpop.f32.mrf.mxu0
      %v707 = vadd.f32 %v678, %v706
      %708 = vmatmul.f32.gmra.mxu0 %v652
      %v709 = vpop.f32.mrf.mxu0
      %v710 = vadd.f32 %v681, %v709
      %711 = vmatmul.f32.gmra.mxu0 %v655
      %v712 = vpop.f32.mrf.mxu0
      %v713 = vadd.f32 %v684, %v712
      %714 = vdwg.mxu0
      %v715 = vsub.f32 %v323, %v704
      %v716 = vsub.f32 %v324, %v707
      %v717 = vsub.f32 %v325, %v710
      %v718 = vsub.f32 %v326, %v713
      %v719 = vsub.f32 0.0, %v704
      %v720 = vsub.f32 0.0, %v707
      %v721 = vsub.f32 0.0, %v710
      %v722 = vsub.f32 0.0, %v713
      %v723 = vmul.f32 %v719, 1.442695
      %v724 = vpow.pop %v723
      %v725 = vmul.f32 %v720, 1.442695
      %v726 = vpow.pop %v725
      %v727 = vmul.f32 %v721, 1.442695
      %v728 = vpow.pop %v727
      %v729 = vmul.f32 %v722, 1.442695
      %v730 = vpow.pop %v729
      %735 = vrot.lane.b32.xlu0 %v724, 120
      %v736 = vpop.permute.xlu0 %735
      %737 = vrot.lane.b32.xlu0 %v726, 120
      %v738 = vpop.permute.xlu0 %737
      %739 = vrot.lane.b32.xlu0 %v728, 120
      %v740 = vpop.permute.xlu0 %739
      %741 = vrot.lane.b32.xlu0 %v730, 120
      %v742 = vpop.permute.xlu0 %741
      %v747 = vmul.f32 %v715, %v736
      %v748 = vmul.f32 %v716, %v738
      %v749 = vmul.f32 %v717, %v740
      %v750 = vmul.f32 %v718, %v742
      %751 = vst.msk [vmem:[%s315] sm:$0xff] %vm335, %v747
      %752 = vst.msk [vmem:[%s315 + $0x8] sm:$0xff] %vm335, %v748
      %753 = vst.msk [vmem:[%s315 + $0x10] sm:$0xff] %vm335, %v749
      %754 = vst.msk [vmem:[%s315 + $0x18] sm:$0xff] %vm335, %v750
      %759 = vrot.lane.b32.xlu0 %v704, 120
      %v760 = vpop.permute.xlu0 %759
      %761 = vrot.lane.b32.xlu0 %v707, 120
      %v762 = vpop.permute.xlu0 %761
      %763 = vrot.lane.b32.xlu0 %v710, 120
      %v764 = vpop.permute.xlu0 %763
      %765 = vrot.lane.b32.xlu0 %v713, 120
      %v766 = vpop.permute.xlu0 %765
      %v771 = vsel %vm335, %v760, 0.0
      %772 = vadd.xlane.f32.xlu0 %v771
      %v773 = vpop.xlane.xlu0 %772
      %v774 = vsel %vm335, %v762, 0.0
      %775 = vadd.xlane.f32.xlu0 %v774
      %v776 = vpop.xlane.xlu0 %775
      %v777 = vsel %vm335, %v764, 0.0
      %778 = vadd.xlane.f32.xlu0 %v777
      %v779 = vpop.xlane.xlu0 %778
      %v780 = vsel %vm335, %v766, 0.0
      %781 = vadd.xlane.f32.xlu0 %v780
      %v782 = vpop.xlane.xlu0 %781
      %v783 = vsub.f32 0.0, %v773
      %v784 = vsub.f32 0.0, %v776
      %v785 = vsub.f32 0.0, %v779
      %v786 = vsub.f32 0.0, %v782
      %vm787 = vcmask 7168
      %788 = vst.msk [vmem:[%s321] sm:$0xff] %vm787, %v783
      %789 = vst.msk [vmem:[%s321 + $0x8] sm:$0xff] %vm787, %v784
      %790 = vst.msk [vmem:[%s321 + $0x10] sm:$0xff] %vm787, %v785
      %791 = vst.msk [vmem:[%s321 + $0x18] sm:$0xff] %vm787, %v786
      %s792 = smul.u32 4, %s20
      %p793 = scmp.lt.s32.totalorder %s792, 7
      %s794 = scalar_select %p793, %s792, 7
      %s795 = smul.addr %s794, 8
      %s796 = scalar_lea.vmem %s7, %s795
      %s797 = smul.u32 4, %s20
      %p798 = scmp.lt.s32.totalorder %s797, 7
      %s799 = scalar_select %p798, %s797, 7
      %s800 = smul.addr %s799, 8
      %s801 = scalar_lea.vmem %s8, %s800
      // Predicated region
      $region49: #{maf_forward.1} parent=47 // pred_check
        %p802 = pneg %p190
      $region50: #{maf_forward.1} parent=47 // pred_check_branch
        %804 = sbr.rel (%p802) target = $region52
      $region51: #{maf_forward.1} parent=47 // pred_region
        %s805 = smul.u32 4, %s20
      $region52: #{maf_forward.1} parent=47 // pred_fallthru
        _
      // Predicated region
      $region53: #{maf_forward.1} parent=47 // pred_check
        %p806 = pneg %p216
      $region54: #{maf_forward.1} parent=47 // pred_check_branch
        %808 = sbr.rel (%p806) target = $region56
      $region55: #{maf_forward.1} parent=47 // pred_region
        %s809 = smul.u32 4, %s20
      $region56: #{maf_forward.1} parent=47 // pred_fallthru
        _
    $region48: #{maf_forward.1} parent=5 // pred_fallthru
      _
    %p810 = scmp.le.s32.totalorder 2, %s15
    // Predicated region
    $region57: #{maf_forward.1} parent=5 // pred_check
      %p811 = pneg %p810
    $region58: #{maf_forward.1} parent=5 // pred_check_branch
      %813 = sbr.rel (%p811) target = $region60
    $region59: #{maf_forward.1} parent=5 // pred_region
      %s814 = ssub.s32 %s15, 2
      // Predicated region
      $region61: #{maf_forward.1} parent=59 // pred_check
        %p815 = pneg %p196
      $region62: #{maf_forward.1} parent=59 // pred_check_branch
        %817 = sbr.rel (%p815) target = $region64
      $region63: #{maf_forward.1} parent=59 // pred_region
        %s818 = smul.u32 4, %s21
        %p819 = scmp.lt.s32.totalorder %s818, 7
        %s820 = scalar_select %p819, %s818, 7
        %s821 = smul.addr %s820, 8
        %s822 = scalar_lea.vmem %s7, %s821
      $region64: #{maf_forward.1} parent=59 // pred_fallthru
        _
      // Predicated region
      $region65: #{maf_forward.1} parent=59 // pred_check
        %p823 = pneg %p222
      $region66: #{maf_forward.1} parent=59 // pred_check_branch
        %825 = sbr.rel (%p823) target = $region68
      $region67: #{maf_forward.1} parent=59 // pred_region
        %s826 = smul.u32 4, %s21
        %p827 = scmp.lt.s32.totalorder %s826, 7
        %s828 = scalar_select %p827, %s826, 7
        %s829 = smul.addr %s828, 8
        %s830 = scalar_lea.vmem %s8, %s829
      $region68: #{maf_forward.1} parent=59 // pred_fallthru
        _
    $region60: #{maf_forward.1} parent=5 // pred_fallthru
      _
  $region6: #{maf_forward.1} parent=0 // loop_footer
    %s19 = sadd.s32 1, %s15
  $region7: #{maf_forward.1} parent=0 // loop_footer_branch
    %14 = sbr.rel target = $region3
  $region8: #{maf_forward.1} parent=0 // loop_exit
    _

</llo_original>
